<compile_context>
chip_gen: v5e
topology: v5e:2x2
jax: 0.10.0
libtpu: 0.0.40
codegen_flags: <defaults>
</compile_context>

<pallas_src>
import functools

import jax
import jax.numpy as jnp
from jax.experimental import pallas as pl
from jax.experimental.pallas import tpu as pltpu


def _round_up(x, m):
    return ((x + m - 1) // m) * m


def _static_pow(x, gamma):
    """x ** gamma; repeated multiplication for static non-negative int gamma."""
    is_int = isinstance(gamma, int) or (
        isinstance(gamma, float) and float(gamma).is_integer())
    if is_int and int(gamma) >= 0:
        g = int(gamma)
        if g == 0:
            return jnp.ones_like(x)
        acc = None
        base = x
        while g:
            if g & 1:
                acc = base if acc is None else acc * base
            g >>= 1
            if g:
                base = base * base
        return acc
    # x >= 0 here (x = 1 - probs with probs in [0, 1]); exp/log go to the EUP.
    return jnp.exp(jnp.float32(gamma) * jnp.log(x))


def _focal_loss_kernel(logits_ref, targets_ref, alpha_ref, out_ref, acc_ref,
                       *, gamma, n_total, blocks_per_split, tn):
    s = pl.program_id(0)          # node-range split (parallel axis)
    i = pl.program_id(1)          # node tile within the split (reduction axis)

    @pl.when(i == 0)
    def _():
        acc_ref[...] = jnp.zeros_like(acc_ref)

    logits = logits_ref[...].astype(jnp.float32)             # (C, TN)
    tgt = targets_ref[...]                                    # (1, TN) int32
    alpha = alpha_ref[...].astype(jnp.float32)                # (C, 1)

    # log-sum-exp over the class axis (sublanes).
    m = jnp.max(logits, axis=0, keepdims=True)                # (1, TN)
    lse = m + jnp.log(jnp.sum(jnp.exp(logits - m), axis=0, keepdims=True))

    # one-hot class mask (scatter_ equivalent); class index lives on sublanes.
    cls = jax.lax.broadcasted_iota(jnp.int32, logits.shape, 0)
    mask = (cls == tgt).astype(jnp.float32)                   # (C, TN)

    logit_t = jnp.sum(logits * mask, axis=0, keepdims=True)   # (1, TN)
    alpha_t = jnp.sum(alpha * mask, axis=0, keepdims=True)    # (1, TN)

    log_p = logit_t - lse                                      # log softmax @ target
    probs = jnp.exp(log_p)
    focal = _static_pow(1.0 - probs, gamma)

    loss = -alpha_t * focal * log_p                            # (1, TN) per-node loss

    # Mask out-of-range nodes: logits are NOT padded, so the ragged tail holds
    # garbage (possibly Inf/NaN).  jnp.where (a select) zeroes it safely.
    node0 = (s * blocks_per_split + i) * tn
    node_idx = node0 + jax.lax.broadcasted_iota(jnp.int32, loss.shape, 1)
    loss = jnp.where(node_idx < n_total, loss, 0.0)

    # Pure elementwise accumulation into the resident VMEM row.
    acc_ref[...] += loss

    @pl.when(i == pl.num_programs(1) - 1)
    def _():
        # One cross-lane reduce per split (XLU has slack here); splat the split
        # sum into the tiny (8, 128) output block.
        split_sum = jnp.sum(acc_ref[...], axis=1, keepdims=True)   # (1, 1)
        out_ref[...] = jnp.broadcast_to(split_sum, out_ref.shape)


def graph_node_focal_loss(logits, targets, alpha=None, *, gamma=2,
                          reduction="mean", tn=65536, n_splits=1,
                          vmem_budget_bytes=12 * 1024 * 1024):
    """logits: (N, C) float (any float dtype), targets: (N,) int, alpha: (C,)/(C,1)."""
    n, c = logits.shape
    if alpha is None:
        alpha = jnp.ones((c,), dtype=jnp.float32)   # module default: ones(classes, 1)
    alpha2d = jnp.asarray(alpha, jnp.float32).reshape(c, 1)

    # C-aware node-tile cap: double-buffered logits, double-buffered (sublane
    # padded) targets and the f32 accumulator row must fit the VMEM budget.
    logits_isz = jnp.dtype(logits.dtype).itemsize
    bytes_per_lane = 2 * c * logits_isz + 2 * 8 * 4 + 8 * 4
    tn_cap = max(128, (vmem_budget_bytes // bytes_per_lane) // 128 * 128)
    tn = max(128, min(_round_up(tn, 128), tn_cap, _round_up(n, 128)))

    blocks = pl.cdiv(n, tn)
    n_splits = n_splits if blocks >= n_splits else 1
    blocks_per_split = pl.cdiv(blocks, n_splits)
    n_pad = n_splits * blocks_per_split * tn

    # Lane-dense layout: classes on sublanes, nodes on lanes.  Logits stay in
    # their native dtype and are NOT padded; only the tiny targets array is.
    logits_t = logits.T                                        # (C, N), native dtype
    targets_i = targets.astype(jnp.int32)
    pad = n_pad - n
    if pad:
        targets_i = jnp.pad(targets_i, (0, pad))
    targets2d = targets_i.reshape(1, n_pad)

    kernel = functools.partial(
        _focal_loss_kernel, gamma=gamma, n_total=n,
        blocks_per_split=blocks_per_split, tn=tn)

    last_block = blocks - 1  # clamp so the unpadded logits array is never over-run

    partial_sums = pl.pallas_call(
        kernel,
        out_shape=jax.ShapeDtypeStruct((8 * n_splits, 128), jnp.float32),
        grid_spec=pltpu.PrefetchScalarGridSpec(
            num_scalar_prefetch=0,
            grid=(n_splits, blocks_per_split),
            in_specs=[
                # logits tile: classes x nodes (native dtype, unpadded -> clamp)
                pl.BlockSpec(
                    (c, tn),
                    lambda s, i: (0, jnp.minimum(s * blocks_per_split + i,
                                                 last_block))),
                # targets tile: 1 x nodes (padded to n_pad)
                pl.BlockSpec((1, tn),
                             lambda s, i: (0, s * blocks_per_split + i)),
                # alpha, broadcast to every tile
                pl.BlockSpec((c, 1), lambda s, i: (0, 0)),
            ],
            out_specs=pl.BlockSpec((8, 128), lambda s, i: (s, 0)),
            scratch_shapes=[pltpu.VMEM((1, tn), jnp.float32)],
        ),
        compiler_params=pltpu.CompilerParams(
            dimension_semantics=("parallel", "arbitrary"),
            vmem_limit_bytes=32 * 1024 * 1024),
    )(logits_t, targets2d, alpha2d)

    # Every element of a split's (8, 128) block equals that split's sum.
    total = jnp.sum(partial_sums[0::8, 0])
    if reduction == "mean":
        return total / jnp.float32(n)
    elif reduction == "sum":
        return total
    else:
        raise NotImplementedError(
            "only 'mean' and 'sum' reductions are implemented")


def _reference(logits, targets, alpha, gamma=2, reduction="mean"):
    p = jax.nn.softmax(logits.astype(jnp.float32), axis=1)
    probs = jnp.take_along_axis(p, targets.reshape(-1, 1), axis=1)
    alpha_t = jnp.asarray(alpha, jnp.float32).reshape(-1)[targets].reshape(-1, 1)
    log_p = jnp.log(probs)
    batch_loss = -alpha_t * jnp.power(1.0 - probs, gamma) * log_p
    return jnp.mean(batch_loss) if reduction == "mean" else jnp.sum(batch_loss)


if __name__ == "__main__":
    key = jax.random.PRNGKey(0)

    # (N, C, logits dtype, tn, n_splits, gamma): exercise the single-tile path,
    # ragged-N + native-bf16 path, multi-tile + 2-split accumulation path,
    # non-multiple-of-8 class count, and the non-integer-gamma path.
    cases = [
        (256, 8, jnp.float32, 65536, 1, 2),
        (300, 8, jnp.bfloat16, 65536, 1, 2),
        (1000, 8, jnp.float32, 128, 2, 2),
        (40, 5, jnp.float32, 65536, 1, 2),
        (256, 8, jnp.float32, 128, 1, 2.5),
    ]
    for idx, (n, c, dt, tn, n_splits, gamma) in enumerate(cases):
        k1, k2, key = jax.random.split(key, 3)
        logits = jax.random.normal(k1, (n, c), dtype=jnp.float32).astype(dt)
        targets = jax.random.randint(k2, (n,), 0, c, dtype=jnp.int32)
        alpha = jnp.ones((c,), dtype=jnp.float32)   # init() default alpha

        loss = graph_node_focal_loss(logits, targets, alpha, gamma=gamma,
                                     reduction="mean", tn=tn, n_splits=n_splits)
        loss = jax.block_until_ready(loss)
        ref = _reference(logits, targets, alpha, gamma=gamma, reduction="mean")
        assert jnp.allclose(loss, ref, rtol=1e-5, atol=1e-5), \
            (n, c, str(dt), float(loss), float(ref))

        if idx == 0:  # also check the 'sum' reduction once
            loss_s = graph_node_focal_loss(logits, targets, alpha, gamma=gamma,
                                           reduction="sum", tn=tn,
                                           n_splits=n_splits)
            loss_s = jax.block_until_ready(loss_s)
            ref_s = _reference(logits, targets, alpha, gamma=gamma,
                               reduction="sum")
            assert jnp.allclose(loss_s, ref_s, rtol=1e-5, atol=1e-4), \
                (float(loss_s), float(ref_s))

    print("KERNEL_OK")
</pallas_src>

<mosaic_0001>
module attributes {stable_mosaic.version = 11 : i64} {
  func.func @_focal_loss_kernel(%arg0: i32, %arg1: i32, %arg2: memref<8x256xf32, #tpu.memory_space<vmem>>, %arg3: memref<1x256xi32, #tpu.memory_space<vmem>>, %arg4: memref<8x1xf32, #tpu.memory_space<vmem>>, %arg5: memref<8x128xf32, #tpu.memory_space<vmem>>, %arg6: memref<1x256xf32, #tpu.memory_space<vmem>>) attributes {dimension_semantics = [#tpu.dimension_semantics<parallel>, #tpu.dimension_semantics<arbitrary>], iteration_bounds = array<i64: 1, 1>, scalar_prefetch = 0 : i64, scratch_operands = 1 : i64, tpu.core_type = #tpu.core_type<tc>, window_params = [{transform_indices = @transform_0, window_bounds = array<i64: 8, 256>}, {transform_indices = @transform_1, window_bounds = array<i64: 1, 256>}, {pipeline_mode = #tpu.pipeline_mode<synchronous>, transform_indices = @transform_2, window_bounds = array<i64: 8, 1>}, {transform_indices = @transform_3, window_bounds = array<i64: 8, 128>}]} {
    %c0_i32 = arith.constant 0 : i32
    %0 = arith.cmpi eq, %arg1, %c0_i32 : i32
    %1 = arith.extui %0 : i1 to i32
    %c0_i32_0 = arith.constant 0 : i32
    %2 = arith.cmpi ne, %1, %c0_i32_0 : i32
    scf.if %2 {
      %cst_19 = arith.constant 0.000000e+00 : f32
      %52 = vector.broadcast %cst_19 : f32 to vector<1x256xf32>
      %c0_20 = arith.constant 0 : index
      %c0_21 = arith.constant 0 : index
      %53 = vector.load %arg6[%c0_20, %c0_21] : memref<1x256xf32, #tpu.memory_space<vmem>>, vector<1x256xf32>
      tpu.vector_store %arg6[%c0_20, %c0_21], %52 {strides = array<i32>} : memref<1x256xf32, #tpu.memory_space<vmem>>, vector<1x256xf32>,
    } else {
    }
    %c0 = arith.constant 0 : index
    %c0_1 = arith.constant 0 : index
    %3 = vector.load %arg2[%c0, %c0_1] : memref<8x256xf32, #tpu.memory_space<vmem>>, vector<8x256xf32>
    %c0_2 = arith.constant 0 : index
    %c0_3 = arith.constant 0 : index
    %4 = vector.load %arg3[%c0_2, %c0_3] : memref<1x256xi32, #tpu.memory_space<vmem>>, vector<1x256xi32>
    %c0_4 = arith.constant 0 : index
    %c0_5 = arith.constant 0 : index
    %5 = vector.load %arg4[%c0_4, %c0_5] : memref<8x1xf32, #tpu.memory_space<vmem>>, vector<8x1xf32>
    %cst = arith.constant dense<0xFF800000> : vector<256xf32>
    %6 = vector.multi_reduction <maximumf>, %3, %cst [0] : vector<8x256xf32> to vector<256xf32>
    %7 = vector.shape_cast %6 : vector<256xf32> to vector<1x256xf32>
    %8 = vector.broadcast %7 : vector<1x256xf32> to vector<8x256xf32>
    %9 = arith.subf %3, %8 : vector<8x256xf32>
    %10 = math.exp %9 : vector<8x256xf32>
    %cst_6 = arith.constant dense<0.000000e+00> : vector<256xf32>
    %11 = vector.multi_reduction <add>, %10, %cst_6 [0] : vector<8x256xf32> to vector<256xf32>
    %12 = vector.shape_cast %11 : vector<256xf32> to vector<1x256xf32>
    %13 = math.log %12 : vector<1x256xf32>
    %14 = arith.addf %7, %13 : vector<1x256xf32>
    %15 = tpu.iota {dimensions = array<i32: 0>} : vector<8x256xi32>
    %16 = vector.broadcast %4 : vector<1x256xi32> to vector<8x256xi32>
    %17 = arith.cmpi eq, %15, %16 : vector<8x256xi32>
    %18 = arith.extui %17 : vector<8x256xi1> to vector<8x256xi32>
    %19 = arith.sitofp %18 : vector<8x256xi32> to vector<8x256xf32>
    %20 = arith.mulf %3, %19 : vector<8x256xf32>
    %cst_7 = arith.constant dense<0.000000e+00> : vector<256xf32>
    %21 = vector.multi_reduction <add>, %20, %cst_7 [0] : vector<8x256xf32> to vector<256xf32>
    %22 = vector.shape_cast %21 : vector<256xf32> to vector<1x256xf32>
    %23 = vector.broadcast %5 : vector<8x1xf32> to vector<8x256xf32>
    %24 = arith.mulf %23, %19 : vector<8x256xf32>
    %cst_8 = arith.constant dense<0.000000e+00> : vector<256xf32>
    %25 = vector.multi_reduction <add>, %24, %cst_8 [0] : vector<8x256xf32> to vector<256xf32>
    %26 = vector.shape_cast %25 : vector<256xf32> to vector<1x256xf32>
    %27 = arith.subf %22, %14 : vector<1x256xf32>
    %28 = math.exp %27 : vector<1x256xf32>
    %cst_9 = arith.constant 1.000000e+00 : f32
    %29 = vector.broadcast %cst_9 : f32 to vector<1x256xf32>
    %30 = arith.subf %29, %28 : vector<1x256xf32>
    %31 = arith.mulf %30, %30 : vector<1x256xf32>
    %cst_10 = arith.constant 0.000000e+00 : f32
    %32 = vector.broadcast %cst_10 : f32 to vector<1x256xf32>
    %33 = arith.subf %32, %26 : vector<1x256xf32>
    %34 = arith.mulf %33, %31 : vector<1x256xf32>
    %35 = arith.mulf %34, %27 : vector<1x256xf32>
    %c1_i32 = arith.constant 1 : i32
    %36 = arith.muli %arg0, %c1_i32 : i32
    %37 = arith.addi %36, %arg1 : i32
    %c256_i32 = arith.constant 256 : i32
    %38 = arith.muli %37, %c256_i32 : i32
    %39 = tpu.iota {dimensions = array<i32: 1>} : vector<1x256xi32>
    %40 = vector.broadcast %38 : i32 to vector<1x256xi32>
    %41 = arith.addi %40, %39 : vector<1x256xi32>
    %c256_i32_11 = arith.constant 256 : i32
    %42 = vector.broadcast %c256_i32_11 : i32 to vector<1x256xi32>
    %43 = arith.cmpi slt, %41, %42 : vector<1x256xi32>
    %cst_12 = arith.constant 0.000000e+00 : f32
    %44 = vector.broadcast %cst_12 : f32 to vector<1x256xf32>
    %45 = arith.select %43, %35, %44 : vector<1x256xi1>, vector<1x256xf32>
    %c0_13 = arith.constant 0 : index
    %c0_14 = arith.constant 0 : index
    %46 = vector.load %arg6[%c0_13, %c0_14] : memref<1x256xf32, #tpu.memory_space<vmem>>, vector<1x256xf32>
    %47 = arith.addf %46, %45 : vector<1x256xf32>
    %c0_15 = arith.constant 0 : index
    %c0_16 = arith.constant 0 : index
    %48 = vector.load %arg6[%c0_15, %c0_16] : memref<1x256xf32, #tpu.memory_space<vmem>>, vector<1x256xf32>
    tpu.vector_store %arg6[%c0_15, %c0_16], %47 {strides = array<i32>} : memref<1x256xf32, #tpu.memory_space<vmem>>, vector<1x256xf32>,
    %c0_i32_17 = arith.constant 0 : i32
    %49 = arith.cmpi eq, %arg1, %c0_i32_17 : i32
    %50 = arith.extui %49 : i1 to i32
    %c0_i32_18 = arith.constant 0 : i32
    %51 = arith.cmpi ne, %50, %c0_i32_18 : i32
    scf.if %51 {
      %c0_19 = arith.constant 0 : index
      %c0_20 = arith.constant 0 : index
      %52 = vector.load %arg6[%c0_19, %c0_20] : memref<1x256xf32, #tpu.memory_space<vmem>>, vector<1x256xf32>
      %cst_21 = arith.constant dense<0.000000e+00> : vector<1xf32>
      %53 = vector.multi_reduction <add>, %52, %cst_21 [1] : vector<1x256xf32> to vector<1xf32>
      %54 = vector.shape_cast %53 : vector<1xf32> to vector<1x1xf32>
      %55 = vector.shape_cast %54 : vector<1x1xf32> to vector<1x1xf32>
      %56 = vector.broadcast %55 : vector<1x1xf32> to vector<8x128xf32>
      %c0_22 = arith.constant 0 : index
      %c0_23 = arith.constant 0 : index
      %57 = vector.load %arg5[%c0_22, %c0_23] : memref<8x128xf32, #tpu.memory_space<vmem>>, vector<8x128xf32>
      tpu.vector_store %arg5[%c0_22, %c0_23], %56 {strides = array<i32>} : memref<8x128xf32, #tpu.memory_space<vmem>>, vector<8x128xf32>,
    } else {
    }
    return
  }
  func.func @transform_0(%arg0: i32, %arg1: i32) -> (i32, i32) {
    %c1_i32 = arith.constant 1 : i32
    %0 = arith.muli %arg0, %c1_i32 : i32
    %1 = arith.addi %0, %arg1 : i32
    %c0_i32 = arith.constant 0 : i32
    %2 = arith.minsi %1, %c0_i32 : i32
    %c0_i32_0 = arith.constant 0 : i32
    %c0_i32_1 = arith.constant 0 : i32
    return %c0_i32_0, %2 : i32, i32
  }
  func.func @transform_1(%arg0: i32, %arg1: i32) -> (i32, i32) {
    %c1_i32 = arith.constant 1 : i32
    %0 = arith.muli %arg0, %c1_i32 : i32
    %1 = arith.addi %0, %arg1 : i32
    %c0_i32 = arith.constant 0 : i32
    %c0_i32_0 = arith.constant 0 : i32
    return %c0_i32, %1 : i32, i32
  }
  func.func @transform_2(%arg0: i32, %arg1: i32) -> (i32, i32) {
    %c0_i32 = arith.constant 0 : i32
    %c0_i32_0 = arith.constant 0 : i32
    %c0_i32_1 = arith.constant 0 : i32
    return %c0_i32, %c0_i32_0 : i32, i32
  }
  func.func @transform_3(%arg0: i32, %arg1: i32) -> (i32, i32) {
    %c0_i32 = arith.constant 0 : i32
    %c0_i32_0 = arith.constant 0 : i32
    return %arg0, %c0_i32 : i32, i32
  }
}

</mosaic_0001>

<llo_original>
// kernel: tpu_custom_call.1
$region0: #{tpu_custom_call.1}
  #allocation0 [shape = 'u32[]', space=smem, size = 0x4, offset = 0x4, fixed_abs, tag = 'smem constant byte address 0x4 - core index']
  #allocation1 [shape = 'u32[72,128]{1,0:T(1,128)}', space=vmem, size = 0x9000, scoped, tag = 'internal scratch']
  #allocation2 [shape = 'f32[1,256]{1,0:T(1,128)}', space=vmem, size = 0x400, scoped, tag = 'scratch operand']
  %s0 = inlined_call_operand.hbm [shape: f32[8,256], index: 0, kind: input, shape index: {}]
  %s1 = inlined_call_operand.vmem [shape: s32[1,256], index: 1, kind: input, shape index: {}]
  %s2 = inlined_call_operand.vmem [shape: f32[8,1], index: 2, kind: input, shape index: {}]
  %s3 = inlined_call_operand.hbm [shape: f32[8,128], index: 3, kind: output, shape index: {}]
  %s4 = sld [smem:[#allocation0]]
  $region34: #{tpu_custom_call.1} parent=0
    _
  %s6 = ssub.s32 1, %s4
  %s7 = scalar_select 0, %s6, %s4
  $region1: #{tpu_custom_call.1} parent=0
    #allocation3 [shape = 'u8[8192]{0}', space=vmem, size = 0x2000, scoped, tag = 'input window, operand 0, single buffered']
    #allocation4 [shape = 's32[1]{0}', space=sflag, size = 0x4, scoped, tag = 'scoped memory for tpu_custom_call.1']
    #allocation5 [shape = 's32[1]{0}', space=sflag, size = 0x4, scoped, tag = 'scoped memory for tpu_custom_call.1']
    #allocation6 [shape = 'u8[4096]{0}', space=vmem, size = 0x1000, scoped, tag = 'output window, operand 0, single buffered']
    %8 = vsyncpa [#allocation4], 0
    %9 = vsyncpa [#allocation5], 0
    // Predicated region
    $region2: #{tpu_custom_call.1} parent=1 // pred_check
      _
    $region3: #{tpu_custom_call.1} parent=1 // pred_check_branch
      %11 = sbr.rel (0) target = $region5
    $region4: #{tpu_custom_call.1} parent=1 // pred_region
      %s12 = sadd.s32 0, 0
      %p13 = scmp.lt.s32.totalorder %s12, 0
      %s14 = scalar_select %p13, %s12, 0
      %s15 = smul.u32 2, %s14
      %17 = vsyncadd [#allocation4], 0
      %s18 = smul.addr %s15, 8
      %s19 = scalar_lea.hbm %s0, %s18
      %s21 = sshll.u32 %s19, 4
      %s22 = int_to_ptr.hbm [resolvable:$true] %s21
      %s23 = sshll.u32 [#allocation3], 4
      %s24 = int_to_ptr.vmem [resolvable:$true] %s23
      %26 = dma.hbm_to_vmem [thread:$0]  %s22, 256, %s24, [#allocation4]
    $region5: #{tpu_custom_call.1} parent=1 // pred_fallthru
      _
    // Predicated region
    $region6: #{tpu_custom_call.1} parent=1 // pred_check
      _
    $region7: #{tpu_custom_call.1} parent=1 // pred_check_branch
      %28 = sbr.rel (0) target = $region9
    $region8: #{tpu_custom_call.1} parent=1 // pred_region
      %s29 = sadd.s32 0, 0
      %s30 = smul.u32 2, %s29
      %p31 = scmp.lt.s32.totalorder %s30, 1
      %s32 = scalar_select %p31, %s30, 1
      %s33 = scalar_lea.vmem %s1, %s32
      %s34 = sadd.s32 0, 0
      %s35 = smul.u32 2, %s34
    $region9: #{tpu_custom_call.1} parent=1 // pred_fallthru
      _
    // Predicated region
    $region10: #{tpu_custom_call.1} parent=1 // pred_check
      _
    $region11: #{tpu_custom_call.1} parent=1 // pred_check_branch
      %37 = sbr.rel (0) target = $region13
    $region12: #{tpu_custom_call.1} parent=1 // pred_region
      _
    $region13: #{tpu_custom_call.1} parent=1 // pred_fallthru
      _
    // Predicated region
    $region14: #{tpu_custom_call.1} parent=1 // pred_check
      _
    $region15: #{tpu_custom_call.1} parent=1 // pred_check_branch
      %39 = sbr.rel (0) target = $region17
    $region16: #{tpu_custom_call.1} parent=1 // pred_region
      %41 = dma.done [#allocation4], 256
    $region17: #{tpu_custom_call.1} parent=1 // pred_fallthru
      _
    %s42 = sadd.s32 0, 0
    %s43 = smul.u32 2, %s42
    %p44 = scmp.lt.s32.totalorder %s43, 1
    %s45 = scalar_select %p44, %s43, 1
    %s46 = scalar_lea.vmem %s1, %s45
    %s47 = sadd.s32 0, 0
    %p48 = scmp.lt.s32.totalorder %s47, 0
    %s49 = scalar_select %p48, %s47, 0
    %s50 = smul.u32 2, %s49
    %s51 = sadd.s32 0, 0
    %s52 = smul.u32 2, %s51
    %p53 = scmp.lt.s32.totalorder %s52, 1
    %s54 = scalar_select %p53, %s52, 1
    %s55 = scalar_lea.vmem %s1, %s54
    %s56 = sadd.s32 0, 0
    %s57 = smul.u32 2, %s56
    %p58 = scmp.eq.s32.totalorder 0, 0
    // Predicated region
    $region18: #{tpu_custom_call.1} parent=1 // pred_check
      %p59 = pneg %p58
    $region19: #{tpu_custom_call.1} parent=1 // pred_check_branch
      %61 = sbr.rel (%p59) target = $region21
    $region20: #{tpu_custom_call.1} parent=1 // pred_region
      %v62 = vlaneseq
      %vm63 = vcmp.ge.s32.totalorder %v62, 0
      %vm64 = vcmp.lt.s32.totalorder %v62, 256
      %vm65 = vmand %vm63, %vm64
      %66 = vst.msk [vmem:[#allocation2] sm:$0x3] %vm65, 0.0
    $region21: #{tpu_custom_call.1} parent=1 // pred_fallthru
      _
    %v67 = vld [vmem:[#allocation3] sm:$0xff]
    %v68 = vld [vmem:[#allocation3 + $0x8] sm:$0xff]
    %v69 = vld [vmem:[%s55] sm:$0x3]
    %v70 = vld [vmem:[%s2] sm:$0xff]
    %v71 = vrot.slane %v67, 4
    %v72 = vmax.f32 %v67, %v71
    %v73 = vrot.slane %v72, 2
    %v74 = vmax.f32 %v72, %v73
    %v75 = vrot.slane %v74, 1
    %v76 = vmax.f32 %v74, %v75
    %v77 = vrot.slane %v68, 4
    %v78 = vmax.f32 %v68, %v77
    %v79 = vrot.slane %v78, 2
    %v80 = vmax.f32 %v78, %v79
    %v81 = vrot.slane %v80, 1
    %v82 = vmax.f32 %v80, %v81
    %v83 = vsub.f32 %v67, %v76
    %v84 = vsub.f32 %v68, %v82
    %v85 = vmul.f32 %v83, 1.442695
    %v86 = vpow.pop %v85
    %v87 = vmul.f32 %v84, 1.442695
    %v88 = vpow.pop %v87
    %v89 = vrot.slane %v86, 4
    %v90 = vadd.f32 %v86, %v89
    %v91 = vrot.slane %v90, 2
    %v92 = vadd.f32 %v90, %v91
    %v93 = vrot.slane %v92, 1
    %v94 = vadd.f32 %v92, %v93
    %v95 = vrot.slane %v88, 4
    %v96 = vadd.f32 %v88, %v95
    %v97 = vrot.slane %v96, 2
    %v98 = vadd.f32 %v96, %v97
    %v99 = vrot.slane %v98, 1
    %v100 = vadd.f32 %v98, %v99
    %v101 = vlog2.pop %v94
    %v102 = vmul.f32 %v101, 0.6931472
    %v103 = vlog2.pop %v100
    %v104 = vmul.f32 %v103, 0.6931472
    %v105 = vadd.f32 %v76, %v102
    %v106 = vadd.f32 %v82, %v104
    %v107 = vlaneseq
    %v108 = vshrl.u32 %v107, 7
    %v109 = vperm.slane %v69, 0
    %v110 = vperm.slane %v69, 1
    %vm111 = vcmp.eq.s32.totalorder %v108, %v109
    %vm112 = vcmp.eq.s32.totalorder %v108, %v110
    %v113 = vsel %vm111, 1, 0
    %v114 = vsel %vm112, 1, 0
    %v115 = vcvt.s32.f32 %v113
    %v116 = vcvt.s32.f32 %v114
    %v117 = vmul.f32 %v67, %v115
    %v118 = vmul.f32 %v68, %v116
    %v119 = vrot.slane %v117, 4
    %v120 = vadd.f32 %v117, %v119
    %v121 = vrot.slane %v120, 2
    %v122 = vadd.f32 %v120, %v121
    %v123 = vrot.slane %v122, 1
    %v124 = vadd.f32 %v122, %v123
    %v125 = vrot.slane %v118, 4
    %v126 = vadd.f32 %v118, %v125
    %v127 = vrot.slane %v126, 2
    %v128 = vadd.f32 %v126, %v127
    %v129 = vrot.slane %v128, 1
    %v130 = vadd.f32 %v128, %v129
    %132 = vset.pattern.permute.xlu0 0
    %133 = vperm.xlu0 %132, %v70
    %v134 = vpop.permute.xlu0 %133
    %v136 = vmul.f32 %v134, %v115
    %v137 = vmul.f32 %v134, %v116
    %v138 = vrot.slane %v136, 4
    %v139 = vadd.f32 %v136, %v138
    %v140 = vrot.slane %v139, 2
    %v141 = vadd.f32 %v139, %v140
    %v142 = vrot.slane %v141, 1
    %v143 = vadd.f32 %v141, %v142
    %v144 = vrot.slane %v137, 4
    %v145 = vadd.f32 %v137, %v144
    %v146 = vrot.slane %v145, 2
    %v147 = vadd.f32 %v145, %v146
    %v148 = vrot.slane %v147, 1
    %v149 = vadd.f32 %v147, %v148
    %v150 = vsub.f32 %v124, %v105
    %v151 = vsub.f32 %v130, %v106
    %v152 = vmul.f32 %v150, 1.442695
    %v153 = vpow.pop %v152
    %v154 = vmul.f32 %v151, 1.442695
    %v155 = vpow.pop %v154
    %v156 = vsub.f32 1.0, %v153
    %v157 = vsub.f32 1.0, %v155
    %v158 = vmul.f32 %v156, %v156
    %v159 = vmul.f32 %v157, %v157
    %v160 = vsub.f32 0.0, %v143
    %v161 = vsub.f32 0.0, %v149
    %v162 = vmul.f32 %v160, %v158
    %v163 = vmul.f32 %v161, %v159
    %v164 = vmul.f32 %v162, %v150
    %v165 = vmul.f32 %v163, %v151
    %s166 = sadd.s32 0, 0
    %s167 = smul.u32 %s166, 256
    %v168 = vlaneseq
    %v169 = vand.u32 %v168, 127
    %v170 = vadd.s32 %v169, 128
    %v171 = vstv %s167
    %v172 = vadd.s32 %v171, %v169
    %v173 = vadd.s32 %v171, %v170
    %vm174 = vcmp.lt.s32.totalorder %v172, 256
    %vm175 = vcmp.lt.s32.totalorder %v173, 256
    %v176 = vsel %vm174, %v164, 0.0
    %v177 = vsel %vm175, %v165, 0.0
    %v178 = vld [vmem:[#allocation2] sm:$0x3]
    %v181 = vrot.slane %v177, 7
    %vm182 = vcmask 1040384
    %v183 = vsel %vm182, %v176, %v181
    %v185 = vadd.f32 %v178, %v183
    %v186 = vlaneseq
    %vm187 = vcmp.ge.s32.totalorder %v186, 0
    %vm188 = vcmp.lt.s32.totalorder %v186, 256
    %vm189 = vmand %vm187, %vm188
    %190 = vst.msk [vmem:[#allocation2] sm:$0x3] %vm189, %v185
    // Predicated region
    $region22: #{tpu_custom_call.1} parent=1 // pred_check
      %p191 = pneg %p58
    $region23: #{tpu_custom_call.1} parent=1 // pred_check_branch
      %193 = sbr.rel (%p191) target = $region25
    $region24: #{tpu_custom_call.1} parent=1 // pred_region
      %v194 = vld [vmem:[#allocation2] sm:$0x3]
      %v196 = vperm.slane %v194, 0
      %v197 = vperm.slane %v194, 1
      %v200 = vsel %vm182, %v196, 0.0
      %v201 = vsel %vm182, %v197, 0.0
      %v202 = vadd.f32 %v200, %v201
      %203 = vadd.xlane.f32.xlu0 %v202
      %v204 = vpop.xlane.xlu0 %203
      %v205 = vperm.slane %v204, 0
      %206 = vst [vmem:[#allocation6] sm:$0xff] %v205
    $region25: #{tpu_custom_call.1} parent=1 // pred_fallthru
      _
    // Predicated region
    $region26: #{tpu_custom_call.1} parent=1 // pred_check
      _
    $region27: #{tpu_custom_call.1} parent=1 // pred_check_branch
      %208 = sbr.rel (0) target = $region29
    $region28: #{tpu_custom_call.1} parent=1 // pred_region
      %210 = vsyncadd [#allocation5], 0
      %s212 = sshll.u32 [#allocation6], 4
      %s213 = int_to_ptr.vmem [resolvable:$true] %s212
      %s214 = sshll.u32 %s3, 4
      %s215 = int_to_ptr.hbm [resolvable:$true] %s214
      %217 = dma.vmem_to_hbm [thread:$0]  %s213, 128, %s215, [#allocation5]
    $region29: #{tpu_custom_call.1} parent=1 // pred_fallthru
      _
    // Predicated region
    $region30: #{tpu_custom_call.1} parent=1 // pred_check
      _
    $region31: #{tpu_custom_call.1} parent=1 // pred_check_branch
      %219 = sbr.rel (0) target = $region33
    $region32: #{tpu_custom_call.1} parent=1 // pred_region
      %221 = dma.done [#allocation5], 128
    $region33: #{tpu_custom_call.1} parent=1 // pred_fallthru
      _
    %222 = vsyncpa [#allocation4], 1
    %223 = vsyncpa [#allocation5], 1

</llo_original>
